<compile_context>
chip_gen: v7x
topology: tpu7x:2x2x1
jax: 0.10.0
libtpu: 0.0.40
codegen_flags: <defaults>
</compile_context>

<pallas_src>
import jax
import jax.numpy as jnp
from jax.experimental import pallas as pl
from jax.experimental.pallas import tpu as pltpu


def mlp_kernel(x_ref, w1t_ref, b1_ref, w2t_ref, b2_ref, w3t_ref, b3_ref, o_ref):
    x = x_ref[...]            # (2, TB)   feature-major activations
    w1t = w1t_ref[...]        # (20, 2)
    w2t = w2t_ref[...]        # (2, 20)
    w3t = w3t_ref[...]        # (2, 2)

    # Layer 1: Linear(2, 20).  K=2 -> two VPU broadcast-FMAs over dense
    # (1, TB) rows; bias (20, 1) folded in as the accumulation start.
    h1 = b1_ref[...] + w1t[:, 0:1] * x[0:1, :] + w1t[:, 1:2] * x[1:2, :]
    h1 = jnp.maximum(h1, 0.0)                                   # (20, TB)

    # Layer 2: Linear(20, 2).  The only real contraction (K=20) -> MXU,
    # f32 accumulation; keeps the VPU free (kernel is otherwise VALU-bound).
    h2 = jnp.dot(w2t, h1, preferred_element_type=jnp.float32) + b2_ref[...]
    h2 = jnp.maximum(h2, 0.0)                                   # (2, TB)

    # Layer 3: Linear(2, 2).  K=2 -> VPU FMAs again, bias folded in.
    o_ref[...] = b3_ref[...] + w3t[:, 0:1] * h2[0:1, :] + w3t[:, 1:2] * h2[1:2, :]


def basic_sequential_forward(x, params):
    """x: (B, 2) float32.  params: w1(2,20), b1(1,20), w2(20,2), b2(1,2),
    w3(2,2), b3(1,2) — torch-equivalent Linear weights stored (in, out)."""
    # Feature-major (lane-dense) weights / biases: (out, in) and (out, 1).
    w1t, b1t = params["w1"].T, params["b1"].T      # (20, 2), (20, 1)
    w2t, b2t = params["w2"].T, params["b2"].T      # (2, 20), (2, 1)
    w3t, b3t = params["w3"].T, params["b3"].T      # (2, 2),  (2, 1)

    B = x.shape[0]
    x_t = x.T                                      # (2, B) feature-major

    if B <= 1024:
        # Single full-extent block: latency path, no grid overhead.
        TB = B
        B_pad = B
    else:
        # >=8 grid steps (feeds both v7x TensorCores), cap block at 32768
        # batch rows, lane-align to 128.
        TB = min(32768, max(512, pl.cdiv(B, 8)))
        TB = 128 * pl.cdiv(TB, 128)
        B_pad = TB * pl.cdiv(B, TB)

    if B_pad != B:
        x_t = jnp.pad(x_t, ((0, 0), (0, B_pad - B)))

    resident = lambda i: (0, 0)   # weights/biases: one VMEM-resident block

    out_t = pl.pallas_call(
        mlp_kernel,
        out_shape=jax.ShapeDtypeStruct((2, B_pad), jnp.float32),
        grid=(B_pad // TB,),
        in_specs=[
            pl.BlockSpec((2, TB), lambda i: (0, i)),   # x: lane-dense batch tile
            pl.BlockSpec((20, 2), resident),           # w1^T
            pl.BlockSpec((20, 1), resident),           # b1
            pl.BlockSpec((2, 20), resident),           # w2^T
            pl.BlockSpec((2, 1), resident),            # b2
            pl.BlockSpec((2, 2), resident),            # w3^T
            pl.BlockSpec((2, 1), resident),            # b3
        ],
        out_specs=pl.BlockSpec((2, TB), lambda i: (0, i)),
        compiler_params=pltpu.CompilerParams(
            dimension_semantics=("parallel",)),        # 2 TCs on v7x; no-op elsewhere
    )(x_t, w1t, b1t, w2t, b2t, w3t, b3t)

    out = out_t.T                                      # back to (B_pad, 2)
    return out[:B] if B_pad != B else out


def init_params(key):
    """Deterministic init mimicking torch.nn.Linear (uniform +/- 1/sqrt(fan_in)).
    Weights stored transposed relative to torch: (in_features, out_features)."""
    def linear(key, fan_in, fan_out):
        kw, kb = jax.random.split(key)
        bound = 1.0 / jnp.sqrt(fan_in)
        w = jax.random.uniform(kw, (fan_in, fan_out), jnp.float32, -bound, bound)
        b = jax.random.uniform(kb, (1, fan_out), jnp.float32, -bound, bound)
        return w, b

    k1, k2, k3 = jax.random.split(key, 3)
    w1, b1 = linear(k1, 2, 20)
    w2, b2 = linear(k2, 20, 2)
    w3, b3 = linear(k3, 2, 2)
    return {"w1": w1, "b1": b1, "w2": w2, "b2": b2, "w3": w3, "b3": b3}


def reference_forward(x, p):
    h1 = jnp.maximum(x @ p["w1"] + p["b1"], 0.0)
    h2 = jnp.maximum(h1 @ p["w2"] + p["b2"], 0.0)
    return h2 @ p["w3"] + p["b3"]


if __name__ == "__main__":
    key = jax.random.PRNGKey(0)
    kx, kp, kx2 = jax.random.split(key, 3)
    params = init_params(kp)

    # Small-batch check (matches the module's tiny 2-feature input).
    batch = 8
    x = jax.random.normal(kx, (batch, 2), jnp.float32)
    out = jax.block_until_ready(basic_sequential_forward(x, params))
    ref = reference_forward(x, params)
    assert out.shape == (batch, 2)
    assert jnp.allclose(out, ref, atol=1e-5, rtol=1e-5)

    # Exercise the tiled (multi-step grid) lane-dense path as well.
    big = 4096
    x2 = jax.random.normal(kx2, (big, 2), jnp.float32)
    out2 = jax.block_until_ready(basic_sequential_forward(x2, params))
    ref2 = reference_forward(x2, params)
    assert out2.shape == (big, 2)
    assert jnp.allclose(out2, ref2, atol=1e-5, rtol=1e-5)

    print("KERNEL_OK")
</pallas_src>

<mosaic_0001>
module attributes {stable_mosaic.version = 11 : i64} {
  func.func @mlp_kernel(%arg0: i32, %arg1: memref<2x8xf32, #tpu.memory_space<vmem>>, %arg2: memref<20x2xf32, #tpu.memory_space<vmem>>, %arg3: memref<20x1xf32, #tpu.memory_space<vmem>>, %arg4: memref<2x20xf32, #tpu.memory_space<vmem>>, %arg5: memref<2x1xf32, #tpu.memory_space<vmem>>, %arg6: memref<2x2xf32, #tpu.memory_space<vmem>>, %arg7: memref<2x1xf32, #tpu.memory_space<vmem>>, %arg8: memref<2x8xf32, #tpu.memory_space<vmem>>) attributes {dimension_semantics = [#tpu.dimension_semantics<parallel>], iteration_bounds = array<i64: 1>, scalar_prefetch = 0 : i64, scratch_operands = 0 : i64, tpu.core_type = #tpu.core_type<tc>, window_params = [{transform_indices = @transform_0, window_bounds = array<i64: 2, 8>}, {pipeline_mode = #tpu.pipeline_mode<synchronous>, transform_indices = @transform_1, window_bounds = array<i64: 20, 2>}, {pipeline_mode = #tpu.pipeline_mode<synchronous>, transform_indices = @transform_2, window_bounds = array<i64: 20, 1>}, {pipeline_mode = #tpu.pipeline_mode<synchronous>, transform_indices = @transform_3, window_bounds = array<i64: 2, 20>}, {pipeline_mode = #tpu.pipeline_mode<synchronous>, transform_indices = @transform_4, window_bounds = array<i64: 2, 1>}, {pipeline_mode = #tpu.pipeline_mode<synchronous>, transform_indices = @transform_5, window_bounds = array<i64: 2, 2>}, {pipeline_mode = #tpu.pipeline_mode<synchronous>, transform_indices = @transform_6, window_bounds = array<i64: 2, 1>}, {transform_indices = @transform_7, window_bounds = array<i64: 2, 8>}]} {
    %c0 = arith.constant 0 : index
    %c0_0 = arith.constant 0 : index
    %0 = vector.load %arg1[%c0, %c0_0] : memref<2x8xf32, #tpu.memory_space<vmem>>, vector<2x8xf32>
    %c0_1 = arith.constant 0 : index
    %c0_2 = arith.constant 0 : index
    %1 = vector.load %arg2[%c0_1, %c0_2] : memref<20x2xf32, #tpu.memory_space<vmem>>, vector<20x2xf32>
    %c0_3 = arith.constant 0 : index
    %c0_4 = arith.constant 0 : index
    %2 = vector.load %arg4[%c0_3, %c0_4] : memref<2x20xf32, #tpu.memory_space<vmem>>, vector<2x20xf32>
    %c0_5 = arith.constant 0 : index
    %c0_6 = arith.constant 0 : index
    %3 = vector.load %arg6[%c0_5, %c0_6] : memref<2x2xf32, #tpu.memory_space<vmem>>, vector<2x2xf32>
    %c0_7 = arith.constant 0 : index
    %c0_8 = arith.constant 0 : index
    %4 = vector.load %arg3[%c0_7, %c0_8] : memref<20x1xf32, #tpu.memory_space<vmem>>, vector<20x1xf32>
    %5 = vector.extract_strided_slice %1 {offsets = [0, 0], sizes = [20, 1], strides = [1, 1]} : vector<20x2xf32> to vector<20x1xf32>
    %6 = vector.extract_strided_slice %0 {offsets = [0, 0], sizes = [1, 8], strides = [1, 1]} : vector<2x8xf32> to vector<1x8xf32>
    %7 = vector.broadcast %5 : vector<20x1xf32> to vector<20x8xf32>
    %8 = vector.broadcast %6 : vector<1x8xf32> to vector<20x8xf32>
    %9 = arith.mulf %7, %8 : vector<20x8xf32>
    %10 = vector.broadcast %4 : vector<20x1xf32> to vector<20x8xf32>
    %11 = arith.addf %10, %9 : vector<20x8xf32>
    %12 = vector.extract_strided_slice %1 {offsets = [0, 1], sizes = [20, 1], strides = [1, 1]} : vector<20x2xf32> to vector<20x1xf32>
    %13 = vector.extract_strided_slice %0 {offsets = [1, 0], sizes = [1, 8], strides = [1, 1]} : vector<2x8xf32> to vector<1x8xf32>
    %14 = vector.broadcast %12 : vector<20x1xf32> to vector<20x8xf32>
    %15 = vector.broadcast %13 : vector<1x8xf32> to vector<20x8xf32>
    %16 = arith.mulf %14, %15 : vector<20x8xf32>
    %17 = arith.addf %11, %16 : vector<20x8xf32>
    %cst = arith.constant 0.000000e+00 : f32
    %18 = vector.broadcast %cst : f32 to vector<20x8xf32>
    %19 = arith.maximumf %17, %18 : vector<20x8xf32>
    %cst_9 = arith.constant dense<0.000000e+00> : vector<2x8xf32>
    %20 = tpu.matmul %2, %19, %cst_9 {dimension_numbers = #tpu.dot_dimension_numbers<[1], [0], [0], [1], [0, 0, 1, 1], [], []>} : vector<2x20xf32>, vector<20x8xf32>, vector<2x8xf32> -> vector<2x8xf32>
    %c0_10 = arith.constant 0 : index
    %c0_11 = arith.constant 0 : index
    %21 = vector.load %arg5[%c0_10, %c0_11] : memref<2x1xf32, #tpu.memory_space<vmem>>, vector<2x1xf32>
    %22 = vector.broadcast %21 : vector<2x1xf32> to vector<2x8xf32>
    %23 = arith.addf %20, %22 : vector<2x8xf32>
    %cst_12 = arith.constant 0.000000e+00 : f32
    %24 = vector.broadcast %cst_12 : f32 to vector<2x8xf32>
    %25 = arith.maximumf %23, %24 : vector<2x8xf32>
    %c0_13 = arith.constant 0 : index
    %c0_14 = arith.constant 0 : index
    %26 = vector.load %arg7[%c0_13, %c0_14] : memref<2x1xf32, #tpu.memory_space<vmem>>, vector<2x1xf32>
    %27 = vector.extract_strided_slice %3 {offsets = [0, 0], sizes = [2, 1], strides = [1, 1]} : vector<2x2xf32> to vector<2x1xf32>
    %28 = vector.extract_strided_slice %25 {offsets = [0, 0], sizes = [1, 8], strides = [1, 1]} : vector<2x8xf32> to vector<1x8xf32>
    %29 = vector.broadcast %27 : vector<2x1xf32> to vector<2x8xf32>
    %30 = vector.broadcast %28 : vector<1x8xf32> to vector<2x8xf32>
    %31 = arith.mulf %29, %30 : vector<2x8xf32>
    %32 = vector.broadcast %26 : vector<2x1xf32> to vector<2x8xf32>
    %33 = arith.addf %32, %31 : vector<2x8xf32>
    %34 = vector.extract_strided_slice %3 {offsets = [0, 1], sizes = [2, 1], strides = [1, 1]} : vector<2x2xf32> to vector<2x1xf32>
    %35 = vector.extract_strided_slice %25 {offsets = [1, 0], sizes = [1, 8], strides = [1, 1]} : vector<2x8xf32> to vector<1x8xf32>
    %36 = vector.broadcast %34 : vector<2x1xf32> to vector<2x8xf32>
    %37 = vector.broadcast %35 : vector<1x8xf32> to vector<2x8xf32>
    %38 = arith.mulf %36, %37 : vector<2x8xf32>
    %39 = arith.addf %33, %38 : vector<2x8xf32>
    %c0_15 = arith.constant 0 : index
    %c0_16 = arith.constant 0 : index
    %40 = vector.load %arg8[%c0_15, %c0_16] : memref<2x8xf32, #tpu.memory_space<vmem>>, vector<2x8xf32>
    tpu.vector_store %arg8[%c0_15, %c0_16], %39 {strides = array<i32>} : memref<2x8xf32, #tpu.memory_space<vmem>>, vector<2x8xf32>,
    return
  }
  func.func @transform_0(%arg0: i32) -> (i32, i32) {
    %c0_i32 = arith.constant 0 : i32
    %c0_i32_0 = arith.constant 0 : i32
    return %c0_i32, %arg0 : i32, i32
  }
  func.func @transform_1(%arg0: i32) -> (i32, i32) {
    %c0_i32 = arith.constant 0 : i32
    %c0_i32_0 = arith.constant 0 : i32
    %c0_i32_1 = arith.constant 0 : i32
    return %c0_i32, %c0_i32_0 : i32, i32
  }
  func.func @transform_2(%arg0: i32) -> (i32, i32) {
    %c0_i32 = arith.constant 0 : i32
    %c0_i32_0 = arith.constant 0 : i32
    %c0_i32_1 = arith.constant 0 : i32
    return %c0_i32, %c0_i32_0 : i32, i32
  }
  func.func @transform_3(%arg0: i32) -> (i32, i32) {
    %c0_i32 = arith.constant 0 : i32
    %c0_i32_0 = arith.constant 0 : i32
    %c0_i32_1 = arith.constant 0 : i32
    return %c0_i32, %c0_i32_0 : i32, i32
  }
  func.func @transform_4(%arg0: i32) -> (i32, i32) {
    %c0_i32 = arith.constant 0 : i32
    %c0_i32_0 = arith.constant 0 : i32
    %c0_i32_1 = arith.constant 0 : i32
    return %c0_i32, %c0_i32_0 : i32, i32
  }
  func.func @transform_5(%arg0: i32) -> (i32, i32) {
    %c0_i32 = arith.constant 0 : i32
    %c0_i32_0 = arith.constant 0 : i32
    %c0_i32_1 = arith.constant 0 : i32
    return %c0_i32, %c0_i32_0 : i32, i32
  }
  func.func @transform_6(%arg0: i32) -> (i32, i32) {
    %c0_i32 = arith.constant 0 : i32
    %c0_i32_0 = arith.constant 0 : i32
    %c0_i32_1 = arith.constant 0 : i32
    return %c0_i32, %c0_i32_0 : i32, i32
  }
  func.func @transform_7(%arg0: i32) -> (i32, i32) {
    %c0_i32 = arith.constant 0 : i32
    %c0_i32_0 = arith.constant 0 : i32
    return %c0_i32, %arg0 : i32, i32
  }
}

</mosaic_0001>

<llo_original>
// kernel: tpu_custom_call.1
$region0: #{tpu_custom_call.1}
  #allocation0 [shape = 'u32[]', space=smem, size = 0x4, offset = 0x4, fixed_abs, tag = 'smem constant byte address 0x4 - core index']
  #allocation1 [shape = 'u32[144,128]{1,0:T(1,128)}', space=vmem, size = 0x12000, scoped, tag = 'internal scratch']
  %s0 = inlined_call_operand.vmem [shape: f32[2,8], index: 0, kind: input, shape index: {}]
  %s1 = inlined_call_operand.vmem [shape: f32[20,2], index: 1, kind: input, shape index: {}]
  %s2 = inlined_call_operand.vmem [shape: f32[20,1], index: 2, kind: input, shape index: {}]
  %s3 = inlined_call_operand.vmem [shape: f32[2,20], index: 3, kind: input, shape index: {}]
  %s4 = inlined_call_operand.vmem [shape: f32[2,1], index: 4, kind: input, shape index: {}]
  %s5 = inlined_call_operand.vmem [shape: f32[2,2], index: 5, kind: input, shape index: {}]
  %s6 = inlined_call_operand.vmem [shape: f32[2,1], index: 6, kind: input, shape index: {}]
  %s7 = inlined_call_operand.hbm [shape: f32[2,8], index: 7, kind: output, shape index: {}]
  %s8 = sld [smem:[#allocation0]]
  $region38: #{tpu_custom_call.1} parent=0
    _
  %s10 = ssub.s32 1, %s8
  %s11 = scalar_select 0, %s10, %s8
  $region1: #{tpu_custom_call.1} parent=0
    #allocation2 [shape = 'u8[1024]{0}', space=vmem, size = 0x400, scoped, tag = 'output window, operand 0, single buffered']
    #allocation3 [shape = 's32[1]{0}', space=sflag, size = 0x4, scoped, tag = 'scoped memory for tpu_custom_call.1']
    %12 = vsyncpa [#allocation3], 0
    // Predicated region
    $region2: #{tpu_custom_call.1} parent=1 // pred_check
      _
    $region3: #{tpu_custom_call.1} parent=1 // pred_check_branch
      %14 = sbr.rel (0) target = $region5
    $region4: #{tpu_custom_call.1} parent=1 // pred_region
      _
    $region5: #{tpu_custom_call.1} parent=1 // pred_fallthru
      _
    // Predicated region
    $region6: #{tpu_custom_call.1} parent=1 // pred_check
      _
    $region7: #{tpu_custom_call.1} parent=1 // pred_check_branch
      %16 = sbr.rel (0) target = $region9
    $region8: #{tpu_custom_call.1} parent=1 // pred_region
      _
    $region9: #{tpu_custom_call.1} parent=1 // pred_fallthru
      _
    // Predicated region
    $region10: #{tpu_custom_call.1} parent=1 // pred_check
      _
    $region11: #{tpu_custom_call.1} parent=1 // pred_check_branch
      %18 = sbr.rel (0) target = $region13
    $region12: #{tpu_custom_call.1} parent=1 // pred_region
      _
    $region13: #{tpu_custom_call.1} parent=1 // pred_fallthru
      _
    // Predicated region
    $region14: #{tpu_custom_call.1} parent=1 // pred_check
      _
    $region15: #{tpu_custom_call.1} parent=1 // pred_check_branch
      %20 = sbr.rel (0) target = $region17
    $region16: #{tpu_custom_call.1} parent=1 // pred_region
      _
    $region17: #{tpu_custom_call.1} parent=1 // pred_fallthru
      _
    // Predicated region
    $region18: #{tpu_custom_call.1} parent=1 // pred_check
      _
    $region19: #{tpu_custom_call.1} parent=1 // pred_check_branch
      %22 = sbr.rel (0) target = $region21
    $region20: #{tpu_custom_call.1} parent=1 // pred_region
      _
    $region21: #{tpu_custom_call.1} parent=1 // pred_fallthru
      _
    // Predicated region
    $region22: #{tpu_custom_call.1} parent=1 // pred_check
      _
    $region23: #{tpu_custom_call.1} parent=1 // pred_check_branch
      %24 = sbr.rel (0) target = $region25
    $region24: #{tpu_custom_call.1} parent=1 // pred_region
      _
    $region25: #{tpu_custom_call.1} parent=1 // pred_fallthru
      _
    // Predicated region
    $region26: #{tpu_custom_call.1} parent=1 // pred_check
      _
    $region27: #{tpu_custom_call.1} parent=1 // pred_check_branch
      %26 = sbr.rel (0) target = $region29
    $region28: #{tpu_custom_call.1} parent=1 // pred_region
      _
    $region29: #{tpu_custom_call.1} parent=1 // pred_fallthru
      _
    %v27 = vld [vmem:[%s0] sm:$0x3]
    %v28 = vld [vmem:[%s1] sm:$0xff]
    %v29 = vld [vmem:[%s1 + $0x8] sm:$0xff]
    %v30 = vld [vmem:[%s1 + $0x10] sm:$0xf]
    %v31 = vld [vmem:[%s3] sm:$0x3]
    %v32 = vld [vmem:[%s5] sm:$0x3]
    %v33 = vld [vmem:[%s2] sm:$0xff]
    %v34 = vld [vmem:[%s2 + $0x8] sm:$0xff]
    %v35 = vld [vmem:[%s2 + $0x10] sm:$0xf]
    %37 = vset.pattern.permute.xlu0 0
    %38 = vperm.xlu0 %37, %v28
    %v39 = vpop.permute.xlu0 %38
    %42 = vset.pattern.permute.xlu0 0
    %43 = vperm.xlu0 %42, %v29
    %v44 = vpop.permute.xlu0 %43
    %47 = vset.pattern.permute.xlu0 0
    %48 = vperm.xlu0 %47, %v30
    %v49 = vpop.permute.xlu0 %48
    %v51 = vlaneseq
    %v52 = vshrl.u32 %v51, 7
    %v53 = vsub.s32 0, %v52
    %v54 = vrot.slane %v27, %v53
    %v55 = vmul.f32 %v39, %v54
    %v56 = vmul.f32 %v44, %v54
    %v57 = vmul.f32 %v49, %v54
    %59 = vset.pattern.permute.xlu0 0
    %60 = vperm.xlu0 %59, %v33
    %v61 = vpop.permute.xlu0 %60
    %64 = vset.pattern.permute.xlu0 0
    %65 = vperm.xlu0 %64, %v34
    %v66 = vpop.permute.xlu0 %65
    %69 = vset.pattern.permute.xlu0 0
    %70 = vperm.xlu0 %69, %v35
    %v71 = vpop.permute.xlu0 %70
    %v73 = vadd.f32 %v61, %v55
    %v74 = vadd.f32 %v66, %v56
    %v75 = vadd.f32 %v71, %v57
    %76 = vset.pattern.permute.xlu0 1
    %77 = vperm.xlu0 %76, %v28
    %v78 = vpop.permute.xlu0 %77
    %80 = vset.pattern.permute.xlu0 1
    %81 = vperm.xlu0 %80, %v29
    %v82 = vpop.permute.xlu0 %81
    %84 = vset.pattern.permute.xlu0 1
    %85 = vperm.xlu0 %84, %v30
    %v86 = vpop.permute.xlu0 %85
    %v88 = vlaneseq
    %v89 = vshrl.u32 %v88, 7
    %v90 = vsub.s32 1, %v89
    %v91 = vrot.slane %v27, %v90
    %v92 = vmul.f32 %v78, %v91
    %v93 = vmul.f32 %v82, %v91
    %v94 = vmul.f32 %v86, %v91
    %v95 = vadd.f32 %v73, %v92
    %v96 = vadd.f32 %v74, %v93
    %v97 = vadd.f32 %v75, %v94
    %v98 = vmax.f32 %v95, 0.0
    %v99 = vmax.f32 %v96, 0.0
    %v100 = vmax.f32 %v97, 0.0
    %v101 = vld [vmem:[%s4] sm:$0x3]
    %103 = vset.pattern.permute.xlu0 0
    %104 = vperm.xlu0 %103, %v101
    %v105 = vpop.permute.xlu0 %104
    %vm107 = vcmask 162816
    %v109 = vsel %vm107, %v31, 0
    %vm111 = vcmask 1043456
    %v113 = vsel %vm111, %v100, 0
    %115 = vmatprep.subr.mxu0 0.0
    %116 = vmatpush1.msra.mxu0 %v98
    %117 = vmatprep.subr.mxu0 0.0
    %118 = vmatpush1.msra.mxu0 %v99
    %119 = vmatprep.subr.mxu0 0.0
    %120 = vmatpush1.msra.mxu0 %v113
    %121 = vmatprep.subr.mxu0 0.0
    %122 = vmatpush1.msra.mxu0 0.0
    %123 = vmatprep.subr.mxu0 0.0
    %124 = vmatpush1.msra.mxu0 0.0
    %125 = vmatprep.subr.mxu0 0.0
    %126 = vmatpush1.msra.mxu0 0.0
    %127 = vmatprep.subr.mxu0 0.0
    %128 = vmatpush1.msra.mxu0 0.0
    %129 = vmatprep.subr.mxu0 0.0
    %130 = vmatpush1.msra.mxu0 0.0
    %131 = vmatprep.subr.mxu0 0.0
    %132 = vmatpush1.msra.mxu0 0.0
    %133 = vmatprep.subr.mxu0 0.0
    %134 = vmatpush1.msra.mxu0 0.0
    %135 = vmatprep.subr.mxu0 0.0
    %136 = vmatpush1.msra.mxu0 0.0
    %137 = vmatprep.subr.mxu0 0.0
    %138 = vmatpush1.msra.mxu0 0.0
    %139 = vmatprep.subr.mxu0 0.0
    %140 = vmatpush1.msra.mxu0 0.0
    %141 = vmatprep.subr.mxu0 0.0
    %142 = vmatpush1.msra.mxu0 0.0
    %143 = vmatprep.subr.mxu0 0.0
    %144 = vmatpush1.msra.mxu0 0.0
    %145 = vmatprep.subr.mxu0 0.0
    %146 = vmatpush1.msra.mxu0 0.0
    %147 = vmatprep.subr.mxu0 0.0
    %148 = vmatpush1.msra.mxu0 0.0
    %149 = vmatprep.subr.mxu0 0.0
    %150 = vmatpush1.msra.mxu0 0.0
    %151 = vmatprep.subr.mxu0 0.0
    %152 = vmatpush1.msra.mxu0 0.0
    %153 = vmatprep.subr.mxu0 0.0
    %154 = vmatpush1.msra.mxu0 0.0
    %155 = vmatprep.subr.mxu0 0.0
    %156 = vmatpush1.msra.mxu0 0.0
    %157 = vmatprep.subr.mxu0 0.0
    %158 = vmatpush1.msra.mxu0 0.0
    %159 = vmatprep.subr.mxu0 0.0
    %160 = vmatpush1.msra.mxu0 0.0
    %161 = vmatprep.subr.mxu0 0.0
    %162 = vmatpush1.msra.mxu0 0.0
    %163 = vmatprep.subr.mxu0 0.0
    %164 = vmatpush1.msra.mxu0 0.0
    %165 = vmatprep.subr.mxu0 0.0
    %166 = vmatpush1.msra.mxu0 0.0
    %167 = vmatprep.subr.mxu0 0.0
    %168 = vmatpush1.msra.mxu0 0.0
    %169 = vmatprep.subr.mxu0 0.0
    %170 = vmatpush1.msra.mxu0 0.0
    %171 = vmatprep.subr.mxu0 0.0
    %172 = vmatpush1.msra.mxu0 0.0
    %173 = vmatprep.subr.mxu0 0.0
    %174 = vmatpush1.msra.mxu0 0.0
    %175 = vmatprep.subr.mxu0 0.0
    %176 = vmatpush1.msra.mxu0 0.0
    %177 = vmatprep.subr.mxu0 0.0
    %178 = vmatpush1.msra.mxu0 0.0
    %179 = vmatprep.mubr.f32.mxu0 0.0
    %180 = vmatmul.mubr.f32.gmra.mrb[0].mxu0 %v109
    %v181 = vpop.f32.mrb[0].mxu0
    %v182 = vadd.f32 %v105, %v181
    %v183 = vpop.f32.mrb[0].mxu0
    %184 = vdwg.mxu0
    %v185 = vmax.f32 %v182, 0.0
    %v186 = vld [vmem:[%s6] sm:$0x3]
    %188 = vset.pattern.permute.xlu0 0
    %189 = vperm.xlu0 %188, %v32
    %v190 = vpop.permute.xlu0 %189
    %v192 = vlaneseq
    %v193 = vshrl.u32 %v192, 7
    %v194 = vsub.s32 0, %v193
    %v195 = vrot.slane %v185, %v194
    %v196 = vmul.f32 %v190, %v195
    %198 = vset.pattern.permute.xlu0 0
    %199 = vperm.xlu0 %198, %v186
    %v200 = vpop.permute.xlu0 %199
    %v202 = vadd.f32 %v200, %v196
    %203 = vset.pattern.permute.xlu0 1
    %204 = vperm.xlu0 %203, %v32
    %v205 = vpop.permute.xlu0 %204
    %v207 = vlaneseq
    %v208 = vshrl.u32 %v207, 7
    %v209 = vsub.s32 1, %v208
    %v210 = vrot.slane %v185, %v209
    %v211 = vmul.f32 %v205, %v210
    %v212 = vadd.f32 %v202, %v211
    %vm213 = vcmask 58368
    %214 = vst.msk [vmem:[#allocation2] sm:$0x3] %vm213, %v212
    // Predicated region
    $region30: #{tpu_custom_call.1} parent=1 // pred_check
      _
    $region31: #{tpu_custom_call.1} parent=1 // pred_check_branch
      %216 = sbr.rel (0) target = $region33
    $region32: #{tpu_custom_call.1} parent=1 // pred_region
      %s218 = ssub.s32 32, 32
      %219 = vsyncadd [#allocation3], %s218
      %s221 = sshll.u32 [#allocation2], 4
      %s222 = int_to_ptr.vmem [resolvable:$true] %s221
      %224 = dma.vmem_to_hbm [thread:$0]  %s222, 32, %s7, [#allocation3]
    $region33: #{tpu_custom_call.1} parent=1 // pred_fallthru
      _
    // Predicated region
    $region34: #{tpu_custom_call.1} parent=1 // pred_check
      _
    $region35: #{tpu_custom_call.1} parent=1 // pred_check_branch
      %226 = sbr.rel (0) target = $region37
    $region36: #{tpu_custom_call.1} parent=1 // pred_region
      %227 = dma.done [#allocation3], 32
    $region37: #{tpu_custom_call.1} parent=1 // pred_fallthru
      _
    %228 = vsyncpa [#allocation3], 1

</llo_original>
